<compile_context>
chip_gen: v5e
topology: v5e:2x2
jax: 0.10.0
libtpu: 0.0.40
codegen_flags: <defaults>
</compile_context>

<pallas_src>
import functools

import jax
import jax.numpy as jnp
from jax.experimental import pallas as pl
from jax.experimental.pallas import tpu as pltpu


def _bottleneck_kernel(x_ref,
                       w1_ref, b1_ref,
                       w2_ref, b2_ref,
                       w3_ref, b3_ref,
                       o_ref, *, mxu_dtype):
    # x_ref block: (Bn, Cin, T), io dtype (bf16 by default).  Channels on sublanes,
    # spatial on lanes.  The small batch-fold axis is unrolled so each b is one clean
    # 2-D (C, T) MXU matmul chain.
    w1 = w1_ref[...]
    w2 = w2_ref[...]
    w3 = w3_ref[...]
    b1 = b1_ref[...]
    b2 = b2_ref[...]
    b3 = b3_ref[...]
    for b in range(x_ref.shape[0]):
        x = x_ref[b]                                              # (Cin, T), io dtype

        # conv1 (1x1) + bn1 (scale folded into w1) + relu
        h = jnp.dot(w1, x.astype(mxu_dtype), preferred_element_type=jnp.float32)
        h = jnp.maximum(h + b1, 0.0)

        # conv2 (1x1, stride=1) + bn2 + relu
        h = jnp.dot(w2, h.astype(mxu_dtype), preferred_element_type=jnp.float32)
        h = jnp.maximum(h + b2, 0.0)

        # conv3 (1x1) + bn3
        h = jnp.dot(w3, h.astype(mxu_dtype), preferred_element_type=jnp.float32)
        h = h + b3

        # residual (downsample=None => identity) + final relu, elementwise in f32
        o_ref[b] = jnp.maximum(h + x.astype(jnp.float32), 0.0).astype(o_ref.dtype)


def fold_bn_into_conv(w_oc_ic, gamma, beta, mean, var, eps=1e-5):
    """Fold eval-mode BatchNorm into a 1x1 conv weight given in (Cout, Cin) layout.

    y = gamma*(W@x - mean)/sqrt(var+eps) + beta  ==  (scale[:,None]*W) @ x + bias[:,None]
    """
    scale = gamma / jnp.sqrt(var + eps)                           # (Cout,)
    w_folded = (w_oc_ic * scale[:, None]).astype(jnp.float32)     # (Cout, Cin)
    bias = (beta - mean * scale)[:, None].astype(jnp.float32)     # (Cout, 1)
    return w_folded, bias


def _round_up(x, m):
    return ((x + m - 1) // m) * m


def _choose_tiles(N, HW, Cin, Cout, P, io_bytes, mxu_bytes, vmem_limit_bytes,
                  t_cap=1024, target_lanes=2048):
    """Pick (Bn, T): batch-fold factor and lane tile, sized to the VMEM budget."""
    # Grid-invariant operands are still double-buffered by the pipeline.
    w_bytes = 2 * mxu_bytes * (P * Cin + P * P + Cout * P) + 2 * 4 * (2 * P + Cout)
    budget = int(vmem_limit_bytes * 0.9) - w_bytes

    def act_bytes(bn, t):
        # Double-buffered x / out tiles (io dtype) + one set of f32 intermediates.
        return 2 * bn * t * (Cin + Cout) * io_bytes + bn * t * (2 * P + Cout) * 4

    T = min(_round_up(t_cap, 128), _round_up(HW, 128))
    while T > 128 and act_bytes(1, T) > budget:
        T -= 128

    Bn = 1
    while Bn < N and Bn * T < target_lanes and act_bytes(Bn + 1, T) <= budget:
        Bn += 1
    return Bn, T


def bottleneck1x1_pallas(x_nchw,
                         w1f, b1, w2f, b2, w3f, b3,
                         *, io_dtype=jnp.bfloat16,
                         mxu_dtype=jnp.bfloat16,
                         t_cap=1024,
                         vmem_limit_bytes=32 * 1024 * 1024):
    N, Cin, H, W = x_nchw.shape
    P = w1f.shape[0]
    Cout = w3f.shape[0]
    assert Cin == Cout, "downsample=None requires inplanes == planes * expansion"

    HW = H * W
    io_bytes = jnp.dtype(io_dtype).itemsize
    mxu_bytes = jnp.dtype(mxu_dtype).itemsize
    Bn, T = _choose_tiles(N, HW, Cin, Cout, P, io_bytes, mxu_bytes,
                          vmem_limit_bytes, t_cap=t_cap)

    # (N, C, H, W) -> (N, C, H*W) is a free view; no pad, no transpose.
    x3 = x_nchw.reshape(N, Cin, HW)
    if x3.dtype != io_dtype:
        # In a real network, feed bf16 activations directly to avoid this one-off cast.
        x3 = x3.astype(io_dtype)

    # One-off cast of the tiny BN-folded weights for the MXU; biases stay f32.
    w1c = w1f.astype(mxu_dtype)
    w2c = w2f.astype(mxu_dtype)
    w3c = w3f.astype(mxu_dtype)
    b1 = b1.astype(jnp.float32)
    b2 = b2.astype(jnp.float32)
    b3 = b3.astype(jnp.float32)

    # HW tiles first so the megacore-parallel extent stays non-degenerate when N == 1.
    grid = (pl.cdiv(HW, T), pl.cdiv(N, Bn))

    def const_spec(shape):
        return pl.BlockSpec(shape, lambda t, n: (0, 0))

    cost = pl.CostEstimate(
        flops=2 * N * HW * (P * Cin + P * P + Cout * P),
        transcendentals=0,
        bytes_accessed=(N * HW * (Cin + Cout) * io_bytes
                        + mxu_bytes * (P * Cin + P * P + Cout * P)
                        + 4 * (2 * P + Cout)))

    kernel = functools.partial(_bottleneck_kernel, mxu_dtype=mxu_dtype)

    out3 = pl.pallas_call(
        kernel,
        out_shape=jax.ShapeDtypeStruct((N, Cout, HW), io_dtype),
        grid=grid,
        in_specs=[
            pl.BlockSpec((Bn, Cin, T), lambda t, n: (n, 0, t)),   # x tile
            const_spec((P, Cin)),                                 # w1 (bn1 scale folded)
            const_spec((P, 1)),                                   # bn1 bias
            const_spec((P, P)),                                   # w2 (bn2 scale folded)
            const_spec((P, 1)),                                   # bn2 bias
            const_spec((Cout, P)),                                # w3 (bn3 scale folded)
            const_spec((Cout, 1)),                                # bn3 bias
        ],
        out_specs=pl.BlockSpec((Bn, Cout, T), lambda t, n: (n, 0, t)),
        compiler_params=pltpu.CompilerParams(
            dimension_semantics=("parallel", "parallel"),
            vmem_limit_bytes=vmem_limit_bytes),
        cost_estimate=cost,
    )(x3, w1c, b1, w2c, b2, w3c, b3)

    return out3.reshape(N, Cout, H, W)


def _reference(x_nchw, w1f, b1, w2f, b2, w3f, b3):
    N, Cin, H, W = x_nchw.shape
    x3 = x_nchw.reshape(N, Cin, H * W).astype(jnp.float32)
    h = jnp.maximum(jnp.einsum('oi,nit->not', w1f, x3) + b1[None], 0.0)
    h = jnp.maximum(jnp.einsum('oi,nit->not', w2f, h) + b2[None], 0.0)
    h = jnp.einsum('oi,nit->not', w3f, h) + b3[None]
    h = jnp.maximum(h + x3, 0.0)
    return h.reshape(N, -1, H, W)


if __name__ == "__main__":
    key = jax.random.PRNGKey(0)

    # Module hyperparams: planes=4, expansion=4 => inplanes = 16 (needed: downsample=None).
    planes = 4
    expansion = 4
    inplanes = planes * expansion
    N, H, W = 2, 16, 16

    keys = jax.random.split(key, 17)

    x = jax.random.normal(keys[0], (N, inplanes, H, W), dtype=jnp.float32)

    # Conv weights in PyTorch 1x1-conv layout (Cout, Cin) (the trailing 1x1 is squeezed).
    w1 = jax.random.normal(keys[1], (planes, inplanes), dtype=jnp.float32) * 0.1
    w2 = jax.random.normal(keys[2], (planes, planes), dtype=jnp.float32) * 0.1
    w3 = jax.random.normal(keys[3], (planes * expansion, planes), dtype=jnp.float32) * 0.1

    def bn_params(k0, k1, k2, k3, c):
        g = 1.0 + 0.1 * jax.random.normal(keys[k0], (c,), dtype=jnp.float32)
        be = 0.1 * jax.random.normal(keys[k1], (c,), dtype=jnp.float32)
        m = 0.1 * jax.random.normal(keys[k2], (c,), dtype=jnp.float32)
        v = jnp.abs(1.0 + 0.1 * jax.random.normal(keys[k3], (c,), dtype=jnp.float32))
        return g, be, m, v

    g1, be1, m1, v1 = bn_params(4, 5, 6, 7, planes)
    g2, be2, m2, v2 = bn_params(8, 9, 10, 11, planes)
    g3, be3, m3, v3 = bn_params(12, 13, 14, 15, planes * expansion)

    w1f, b1 = fold_bn_into_conv(w1, g1, be1, m1, v1)
    w2f, b2 = fold_bn_into_conv(w2, g2, be2, m2, v2)
    w3f, b3 = fold_bn_into_conv(w3, g3, be3, m3, v3)

    ref = _reference(x, w1f, b1, w2f, b2, w3f, b3)

    # f32 I/O + f32 MXU path: exact check against the reference.
    out_f32 = jax.block_until_ready(
        bottleneck1x1_pallas(x, w1f, b1, w2f, b2, w3f, b3,
                             io_dtype=jnp.float32, mxu_dtype=jnp.float32))
    assert out_f32.shape == (N, inplanes, H, W)
    assert jnp.allclose(out_f32, ref, atol=1e-5, rtol=1e-5)

    # Default fast path: bf16 activations in HBM, bf16 MXU, f32 accumulate/elementwise.
    out_bf16 = jax.block_until_ready(
        bottleneck1x1_pallas(x.astype(jnp.bfloat16), w1f, b1, w2f, b2, w3f, b3))
    assert out_bf16.dtype == jnp.bfloat16
    assert out_bf16.shape == (N, inplanes, H, W)
    assert jnp.allclose(out_bf16.astype(jnp.float32), ref, atol=5e-2, rtol=5e-2)

    # Ragged spatial size (HW not a multiple of the lane tile): no pad / slice needed;
    # tail-block out-of-range lanes are masked on the store and the op is columnwise,
    # so valid outputs are unaffected.
    N2, H2, W2 = 2, 33, 33            # HW = 1089 -> one 1024 tile + ragged 65 tail
    x2 = jax.random.normal(keys[16], (N2, inplanes, H2, W2), dtype=jnp.float32)
    ref2 = _reference(x2, w1f, b1, w2f, b2, w3f, b3)
    out2 = jax.block_until_ready(
        bottleneck1x1_pallas(x2, w1f, b1, w2f, b2, w3f, b3,
                             io_dtype=jnp.float32, mxu_dtype=jnp.float32))
    assert out2.shape == (N2, inplanes, H2, W2)
    assert jnp.allclose(out2, ref2, atol=1e-5, rtol=1e-5)

    print("KERNEL_OK")
</pallas_src>

<mosaic_0001>
module attributes {stable_mosaic.version = 11 : i64} {
  func.func @_bottleneck_kernel(%arg0: i32, %arg1: i32, %arg2: memref<2x16x256xf32, #tpu.memory_space<vmem>>, %arg3: memref<4x16xf32, #tpu.memory_space<vmem>>, %arg4: memref<4x1xf32, #tpu.memory_space<vmem>>, %arg5: memref<4x4xf32, #tpu.memory_space<vmem>>, %arg6: memref<4x1xf32, #tpu.memory_space<vmem>>, %arg7: memref<16x4xf32, #tpu.memory_space<vmem>>, %arg8: memref<16x1xf32, #tpu.memory_space<vmem>>, %arg9: memref<2x16x256xf32, #tpu.memory_space<vmem>>) attributes {dimension_semantics = [#tpu.dimension_semantics<parallel>, #tpu.dimension_semantics<parallel>], iteration_bounds = array<i64: 1, 1>, scalar_prefetch = 0 : i64, scratch_operands = 0 : i64, tpu.core_type = #tpu.core_type<tc>, window_params = [{transform_indices = @transform_0, window_bounds = array<i64: 2, 16, 256>}, {pipeline_mode = #tpu.pipeline_mode<synchronous>, transform_indices = @transform_1, window_bounds = array<i64: 4, 16>}, {pipeline_mode = #tpu.pipeline_mode<synchronous>, transform_indices = @transform_2, window_bounds = array<i64: 4, 1>}, {pipeline_mode = #tpu.pipeline_mode<synchronous>, transform_indices = @transform_3, window_bounds = array<i64: 4, 4>}, {pipeline_mode = #tpu.pipeline_mode<synchronous>, transform_indices = @transform_4, window_bounds = array<i64: 4, 1>}, {pipeline_mode = #tpu.pipeline_mode<synchronous>, transform_indices = @transform_5, window_bounds = array<i64: 16, 4>}, {pipeline_mode = #tpu.pipeline_mode<synchronous>, transform_indices = @transform_6, window_bounds = array<i64: 16, 1>}, {transform_indices = @transform_7, window_bounds = array<i64: 2, 16, 256>}]} {
    %c0 = arith.constant 0 : index
    %c0_0 = arith.constant 0 : index
    %0 = vector.load %arg3[%c0, %c0_0] : memref<4x16xf32, #tpu.memory_space<vmem>>, vector<4x16xf32>
    %c0_1 = arith.constant 0 : index
    %c0_2 = arith.constant 0 : index
    %1 = vector.load %arg5[%c0_1, %c0_2] : memref<4x4xf32, #tpu.memory_space<vmem>>, vector<4x4xf32>
    %c0_3 = arith.constant 0 : index
    %c0_4 = arith.constant 0 : index
    %2 = vector.load %arg7[%c0_3, %c0_4] : memref<16x4xf32, #tpu.memory_space<vmem>>, vector<16x4xf32>
    %c0_5 = arith.constant 0 : index
    %c0_6 = arith.constant 0 : index
    %3 = vector.load %arg4[%c0_5, %c0_6] : memref<4x1xf32, #tpu.memory_space<vmem>>, vector<4x1xf32>
    %c0_7 = arith.constant 0 : index
    %c0_8 = arith.constant 0 : index
    %4 = vector.load %arg6[%c0_7, %c0_8] : memref<4x1xf32, #tpu.memory_space<vmem>>, vector<4x1xf32>
    %c0_9 = arith.constant 0 : index
    %c0_10 = arith.constant 0 : index
    %5 = vector.load %arg8[%c0_9, %c0_10] : memref<16x1xf32, #tpu.memory_space<vmem>>, vector<16x1xf32>
    %c0_11 = arith.constant 0 : index
    %c0_12 = arith.constant 0 : index
    %c0_13 = arith.constant 0 : index
    %6 = vector.load %arg2[%c0_11, %c0_12, %c0_13] : memref<2x16x256xf32, #tpu.memory_space<vmem>>, vector<1x16x256xf32>
    %7 = vector.shape_cast %6 : vector<1x16x256xf32> to vector<16x256xf32>
    %cst = arith.constant dense<0.000000e+00> : vector<4x256xf32>
    %8 = tpu.matmul %0, %7, %cst {dimension_numbers = #tpu.dot_dimension_numbers<[1], [0], [0], [1], [0, 0, 1, 1], [], []>} : vector<4x16xf32>, vector<16x256xf32>, vector<4x256xf32> -> vector<4x256xf32>
    %9 = vector.broadcast %3 : vector<4x1xf32> to vector<4x256xf32>
    %10 = arith.addf %8, %9 : vector<4x256xf32>
    %cst_14 = arith.constant 0.000000e+00 : f32
    %11 = vector.broadcast %cst_14 : f32 to vector<4x256xf32>
    %12 = arith.maximumf %10, %11 : vector<4x256xf32>
    %cst_15 = arith.constant dense<0.000000e+00> : vector<4x256xf32>
    %13 = tpu.matmul %1, %12, %cst_15 {dimension_numbers = #tpu.dot_dimension_numbers<[1], [0], [0], [1], [0, 0, 1, 1], [], []>} : vector<4x4xf32>, vector<4x256xf32>, vector<4x256xf32> -> vector<4x256xf32>
    %14 = vector.broadcast %4 : vector<4x1xf32> to vector<4x256xf32>
    %15 = arith.addf %13, %14 : vector<4x256xf32>
    %cst_16 = arith.constant 0.000000e+00 : f32
    %16 = vector.broadcast %cst_16 : f32 to vector<4x256xf32>
    %17 = arith.maximumf %15, %16 : vector<4x256xf32>
    %cst_17 = arith.constant dense<0.000000e+00> : vector<16x256xf32>
    %18 = tpu.matmul %2, %17, %cst_17 {dimension_numbers = #tpu.dot_dimension_numbers<[1], [0], [0], [1], [0, 0, 1, 1], [], []>} : vector<16x4xf32>, vector<4x256xf32>, vector<16x256xf32> -> vector<16x256xf32>
    %19 = vector.broadcast %5 : vector<16x1xf32> to vector<16x256xf32>
    %20 = arith.addf %18, %19 : vector<16x256xf32>
    %21 = arith.addf %20, %7 : vector<16x256xf32>
    %cst_18 = arith.constant 0.000000e+00 : f32
    %22 = vector.broadcast %cst_18 : f32 to vector<16x256xf32>
    %23 = arith.maximumf %21, %22 : vector<16x256xf32>
    %c0_19 = arith.constant 0 : index
    %c0_20 = arith.constant 0 : index
    %c0_21 = arith.constant 0 : index
    %24 = vector.load %arg9[%c0_19, %c0_20, %c0_21] : memref<2x16x256xf32, #tpu.memory_space<vmem>>, vector<1x16x256xf32>
    %25 = vector.shape_cast %24 : vector<1x16x256xf32> to vector<16x256xf32>
    %26 = vector.shape_cast %23 : vector<16x256xf32> to vector<1x16x256xf32>
    tpu.vector_store %arg9[%c0_19, %c0_20, %c0_21], %26 {strides = array<i32>} : memref<2x16x256xf32, #tpu.memory_space<vmem>>, vector<1x16x256xf32>,
    %c1 = arith.constant 1 : index
    %c0_22 = arith.constant 0 : index
    %c0_23 = arith.constant 0 : index
    %27 = vector.load %arg2[%c1, %c0_22, %c0_23] : memref<2x16x256xf32, #tpu.memory_space<vmem>>, vector<1x16x256xf32>
    %28 = vector.shape_cast %27 : vector<1x16x256xf32> to vector<16x256xf32>
    %cst_24 = arith.constant dense<0.000000e+00> : vector<4x256xf32>
    %29 = tpu.matmul %0, %28, %cst_24 {dimension_numbers = #tpu.dot_dimension_numbers<[1], [0], [0], [1], [0, 0, 1, 1], [], []>} : vector<4x16xf32>, vector<16x256xf32>, vector<4x256xf32> -> vector<4x256xf32>
    %30 = vector.broadcast %3 : vector<4x1xf32> to vector<4x256xf32>
    %31 = arith.addf %29, %30 : vector<4x256xf32>
    %cst_25 = arith.constant 0.000000e+00 : f32
    %32 = vector.broadcast %cst_25 : f32 to vector<4x256xf32>
    %33 = arith.maximumf %31, %32 : vector<4x256xf32>
    %cst_26 = arith.constant dense<0.000000e+00> : vector<4x256xf32>
    %34 = tpu.matmul %1, %33, %cst_26 {dimension_numbers = #tpu.dot_dimension_numbers<[1], [0], [0], [1], [0, 0, 1, 1], [], []>} : vector<4x4xf32>, vector<4x256xf32>, vector<4x256xf32> -> vector<4x256xf32>
    %35 = vector.broadcast %4 : vector<4x1xf32> to vector<4x256xf32>
    %36 = arith.addf %34, %35 : vector<4x256xf32>
    %cst_27 = arith.constant 0.000000e+00 : f32
    %37 = vector.broadcast %cst_27 : f32 to vector<4x256xf32>
    %38 = arith.maximumf %36, %37 : vector<4x256xf32>
    %cst_28 = arith.constant dense<0.000000e+00> : vector<16x256xf32>
    %39 = tpu.matmul %2, %38, %cst_28 {dimension_numbers = #tpu.dot_dimension_numbers<[1], [0], [0], [1], [0, 0, 1, 1], [], []>} : vector<16x4xf32>, vector<4x256xf32>, vector<16x256xf32> -> vector<16x256xf32>
    %40 = vector.broadcast %5 : vector<16x1xf32> to vector<16x256xf32>
    %41 = arith.addf %39, %40 : vector<16x256xf32>
    %42 = arith.addf %41, %28 : vector<16x256xf32>
    %cst_29 = arith.constant 0.000000e+00 : f32
    %43 = vector.broadcast %cst_29 : f32 to vector<16x256xf32>
    %44 = arith.maximumf %42, %43 : vector<16x256xf32>
    %c1_30 = arith.constant 1 : index
    %c0_31 = arith.constant 0 : index
    %c0_32 = arith.constant 0 : index
    %45 = vector.load %arg9[%c1_30, %c0_31, %c0_32] : memref<2x16x256xf32, #tpu.memory_space<vmem>>, vector<1x16x256xf32>
    %46 = vector.shape_cast %45 : vector<1x16x256xf32> to vector<16x256xf32>
    %47 = vector.shape_cast %44 : vector<16x256xf32> to vector<1x16x256xf32>
    tpu.vector_store %arg9[%c1_30, %c0_31, %c0_32], %47 {strides = array<i32>} : memref<2x16x256xf32, #tpu.memory_space<vmem>>, vector<1x16x256xf32>,
    return
  }
  func.func @transform_0(%arg0: i32, %arg1: i32) -> (i32, i32, i32) {
    %c0_i32 = arith.constant 0 : i32
    %c0_i32_0 = arith.constant 0 : i32
    return %arg1, %c0_i32, %arg0 : i32, i32, i32
  }
  func.func @transform_1(%arg0: i32, %arg1: i32) -> (i32, i32) {
    %c0_i32 = arith.constant 0 : i32
    %c0_i32_0 = arith.constant 0 : i32
    %c0_i32_1 = arith.constant 0 : i32
    return %c0_i32, %c0_i32_0 : i32, i32
  }
  func.func @transform_2(%arg0: i32, %arg1: i32) -> (i32, i32) {
    %c0_i32 = arith.constant 0 : i32
    %c0_i32_0 = arith.constant 0 : i32
    %c0_i32_1 = arith.constant 0 : i32
    return %c0_i32, %c0_i32_0 : i32, i32
  }
  func.func @transform_3(%arg0: i32, %arg1: i32) -> (i32, i32) {
    %c0_i32 = arith.constant 0 : i32
    %c0_i32_0 = arith.constant 0 : i32
    %c0_i32_1 = arith.constant 0 : i32
    return %c0_i32, %c0_i32_0 : i32, i32
  }
  func.func @transform_4(%arg0: i32, %arg1: i32) -> (i32, i32) {
    %c0_i32 = arith.constant 0 : i32
    %c0_i32_0 = arith.constant 0 : i32
    %c0_i32_1 = arith.constant 0 : i32
    return %c0_i32, %c0_i32_0 : i32, i32
  }
  func.func @transform_5(%arg0: i32, %arg1: i32) -> (i32, i32) {
    %c0_i32 = arith.constant 0 : i32
    %c0_i32_0 = arith.constant 0 : i32
    %c0_i32_1 = arith.constant 0 : i32
    return %c0_i32, %c0_i32_0 : i32, i32
  }
  func.func @transform_6(%arg0: i32, %arg1: i32) -> (i32, i32) {
    %c0_i32 = arith.constant 0 : i32
    %c0_i32_0 = arith.constant 0 : i32
    %c0_i32_1 = arith.constant 0 : i32
    return %c0_i32, %c0_i32_0 : i32, i32
  }
  func.func @transform_7(%arg0: i32, %arg1: i32) -> (i32, i32, i32) {
    %c0_i32 = arith.constant 0 : i32
    %c0_i32_0 = arith.constant 0 : i32
    return %arg1, %c0_i32, %arg0 : i32, i32, i32
  }
}

</mosaic_0001>

<llo_original>
// kernel: tpu_custom_call.1
$region0: #{tpu_custom_call.1}
  #allocation0 [shape = 'u32[]', space=smem, size = 0x4, offset = 0x4, fixed_abs, tag = 'smem constant byte address 0x4 - core index']
  #allocation1 [shape = 'u32[72,128]{1,0:T(1,128)}', space=vmem, size = 0x9000, scoped, tag = 'internal scratch']
  %s0 = inlined_call_operand.hbm [shape: f32[2,16,256], index: 0, kind: input, shape index: {}]
  %s1 = inlined_call_operand.vmem [shape: f32[4,16], index: 1, kind: input, shape index: {}]
  %s2 = inlined_call_operand.vmem [shape: f32[4,1], index: 2, kind: input, shape index: {}]
  %s3 = inlined_call_operand.vmem [shape: f32[4,4], index: 3, kind: input, shape index: {}]
  %s4 = inlined_call_operand.vmem [shape: f32[4,1], index: 4, kind: input, shape index: {}]
  %s5 = inlined_call_operand.vmem [shape: f32[16,4], index: 5, kind: input, shape index: {}]
  %s6 = inlined_call_operand.vmem [shape: f32[16,1], index: 6, kind: input, shape index: {}]
  %s7 = inlined_call_operand.hbm [shape: f32[2,16,256], index: 7, kind: output, shape index: {}]
  %s8 = sld [smem:[#allocation0]]
  $region42: #{tpu_custom_call.1} parent=0
    _
  %s10 = ssub.s32 1, %s8
  %s11 = scalar_select 0, %s10, %s8
  $region1: #{tpu_custom_call.1} parent=0
    #allocation2 [shape = 'u8[32768]{0}', space=vmem, size = 0x8000, scoped, tag = 'input window, operand 0, single buffered']
    #allocation3 [shape = 's32[1]{0}', space=sflag, size = 0x4, scoped, tag = 'scoped memory for tpu_custom_call.1']
    #allocation4 [shape = 's32[1]{0}', space=sflag, size = 0x4, scoped, tag = 'scoped memory for tpu_custom_call.1']
    #allocation5 [shape = 'u8[32768]{0}', space=vmem, size = 0x8000, scoped, tag = 'output window, operand 0, single buffered']
    %12 = vsyncpa [#allocation3], 0
    %13 = vsyncpa [#allocation4], 0
    // Predicated region
    $region2: #{tpu_custom_call.1} parent=1 // pred_check
      _
    $region3: #{tpu_custom_call.1} parent=1 // pred_check_branch
      %15 = sbr.rel (0) target = $region5
    $region4: #{tpu_custom_call.1} parent=1 // pred_region
      %17 = vsyncadd [#allocation3], 0
      %s18 = sshll.u32 %s0, 4
      %s19 = int_to_ptr.hbm [resolvable:$true] %s18
      %s20 = sshll.u32 [#allocation2], 4
      %s21 = int_to_ptr.vmem [resolvable:$true] %s20
      %26 = dma.hbm_to_vmem [thread:$0]  %s19, 1024, %s21, [#allocation3], 256, 256, 16
    $region5: #{tpu_custom_call.1} parent=1 // pred_fallthru
      _
    // Predicated region
    $region6: #{tpu_custom_call.1} parent=1 // pred_check
      _
    $region7: #{tpu_custom_call.1} parent=1 // pred_check_branch
      %28 = sbr.rel (0) target = $region9
    $region8: #{tpu_custom_call.1} parent=1 // pred_region
      _
    $region9: #{tpu_custom_call.1} parent=1 // pred_fallthru
      _
    // Predicated region
    $region10: #{tpu_custom_call.1} parent=1 // pred_check
      _
    $region11: #{tpu_custom_call.1} parent=1 // pred_check_branch
      %30 = sbr.rel (0) target = $region13
    $region12: #{tpu_custom_call.1} parent=1 // pred_region
      _
    $region13: #{tpu_custom_call.1} parent=1 // pred_fallthru
      _
    // Predicated region
    $region14: #{tpu_custom_call.1} parent=1 // pred_check
      _
    $region15: #{tpu_custom_call.1} parent=1 // pred_check_branch
      %32 = sbr.rel (0) target = $region17
    $region16: #{tpu_custom_call.1} parent=1 // pred_region
      _
    $region17: #{tpu_custom_call.1} parent=1 // pred_fallthru
      _
    // Predicated region
    $region18: #{tpu_custom_call.1} parent=1 // pred_check
      _
    $region19: #{tpu_custom_call.1} parent=1 // pred_check_branch
      %34 = sbr.rel (0) target = $region21
    $region20: #{tpu_custom_call.1} parent=1 // pred_region
      _
    $region21: #{tpu_custom_call.1} parent=1 // pred_fallthru
      _
    // Predicated region
    $region22: #{tpu_custom_call.1} parent=1 // pred_check
      _
    $region23: #{tpu_custom_call.1} parent=1 // pred_check_branch
      %36 = sbr.rel (0) target = $region25
    $region24: #{tpu_custom_call.1} parent=1 // pred_region
      _
    $region25: #{tpu_custom_call.1} parent=1 // pred_fallthru
      _
    // Predicated region
    $region26: #{tpu_custom_call.1} parent=1 // pred_check
      _
    $region27: #{tpu_custom_call.1} parent=1 // pred_check_branch
      %38 = sbr.rel (0) target = $region29
    $region28: #{tpu_custom_call.1} parent=1 // pred_region
      _
    $region29: #{tpu_custom_call.1} parent=1 // pred_fallthru
      _
    // Predicated region
    $region30: #{tpu_custom_call.1} parent=1 // pred_check
      _
    $region31: #{tpu_custom_call.1} parent=1 // pred_check_branch
      %40 = sbr.rel (0) target = $region33
    $region32: #{tpu_custom_call.1} parent=1 // pred_region
      %42 = dma.done [#allocation3], 1024
    $region33: #{tpu_custom_call.1} parent=1 // pred_fallthru
      _
    %v43 = vld [vmem:[%s1] sm:$0xf]
    %v44 = vld [vmem:[%s3] sm:$0xf]
    %v45 = vld [vmem:[%s5] sm:$0xff]
    %v46 = vld [vmem:[%s5 + $0x8] sm:$0xff]
    %v47 = vld [vmem:[%s2] sm:$0xf]
    %v48 = vld [vmem:[%s4] sm:$0xf]
    %v49 = vld [vmem:[%s6] sm:$0xff]
    %v50 = vld [vmem:[%s6 + $0x8] sm:$0xff]
    %v51 = vld [vmem:[#allocation2] sm:$0xff]
    %v52 = vld [vmem:[#allocation2 + $0x8] sm:$0xff]
    %v53 = vld [vmem:[#allocation2 + $0x10] sm:$0xff]
    %v54 = vld [vmem:[#allocation2 + $0x18] sm:$0xff]
    %56 = vset.pattern.permute.xlu0 0
    %57 = vperm.xlu0 %56, %v47
    %v58 = vpop.permute.xlu0 %57
    %vm60 = vcmask 130048
    %v62 = vsel %vm60, %v43, 0
    %64 = vmatpush.msra.mxu0 0.0
    %65 = vmatpush.msra.mxu0 0.0
    %66 = vmatpush.msra.mxu0 0.0
    %67 = vmatpush.msra.mxu0 0.0
    %68 = vmatpush.msra.mxu0 0.0
    %69 = vmatpush.msra.mxu0 0.0
    %70 = vmatpush.msra.mxu0 0.0
    %71 = vmatpush.msra.mxu0 0.0
    %72 = vmatpush.msra.mxu0 0.0
    %73 = vmatpush.msra.mxu0 0.0
    %74 = vmatpush.msra.mxu0 0.0
    %75 = vmatpush.msra.mxu0 0.0
    %76 = vmatpush.msra.mxu0 0.0
    %77 = vmatpush.msra.mxu0 0.0
    %78 = vmatpush.msra.mxu0 %v53
    %79 = vmatpush.msra.mxu0 %v51
    %80 = vmatmul.f32.gmra.mxu0 %v62
    %v81 = vpop.f32.mrf.mxu0
    %v82 = vadd.f32 %v58, %v81
    %83 = vdwg.mxu0
    %84 = vmatpush.msra.mxu0 0.0
    %85 = vmatpush.msra.mxu0 0.0
    %86 = vmatpush.msra.mxu0 0.0
    %87 = vmatpush.msra.mxu0 0.0
    %88 = vmatpush.msra.mxu0 0.0
    %89 = vmatpush.msra.mxu0 0.0
    %90 = vmatpush.msra.mxu0 0.0
    %91 = vmatpush.msra.mxu0 0.0
    %92 = vmatpush.msra.mxu0 0.0
    %93 = vmatpush.msra.mxu0 0.0
    %94 = vmatpush.msra.mxu0 0.0
    %95 = vmatpush.msra.mxu0 0.0
    %96 = vmatpush.msra.mxu0 0.0
    %97 = vmatpush.msra.mxu0 0.0
    %98 = vmatpush.msra.mxu0 %v54
    %99 = vmatpush.msra.mxu0 %v52
    %100 = vmatmul.f32.gmra.mxu0 %v62
    %v101 = vpop.f32.mrf.mxu0
    %v102 = vadd.f32 %v58, %v101
    %103 = vdwg.mxu0
    %v104 = vmax.f32 %v82, 0.0
    %v105 = vmax.f32 %v102, 0.0
    %107 = vset.pattern.permute.xlu0 0
    %108 = vperm.xlu0 %107, %v48
    %v109 = vpop.permute.xlu0 %108
    %vm111 = vcmask 31744
    %v113 = vsel %vm111, %v44, 0
    %vm115 = vcmask 1043456
    %v117 = vsel %vm115, %v104, 0
    %v120 = vsel %vm115, %v105, 0
    %122 = vmatpush.msra.mxu0 0.0
    %123 = vmatpush.msra.mxu0 0.0
    %124 = vmatpush.msra.mxu0 0.0
    %125 = vmatpush.msra.mxu0 0.0
    %126 = vmatpush.msra.mxu0 0.0
    %127 = vmatpush.msra.mxu0 0.0
    %128 = vmatpush.msra.mxu0 0.0
    %129 = vmatpush.msra.mxu0 0.0
    %130 = vmatpush.msra.mxu0 0.0
    %131 = vmatpush.msra.mxu0 0.0
    %132 = vmatpush.msra.mxu0 0.0
    %133 = vmatpush.msra.mxu0 0.0
    %134 = vmatpush.msra.mxu0 0.0
    %135 = vmatpush.msra.mxu0 0.0
    %136 = vmatpush.msra.mxu0 0.0
    %137 = vmatpush.msra.mxu0 %v117
    %138 = vmatmul.f32.gmra.mxu0 %v113
    %v139 = vpop.f32.mrf.mxu0
    %v140 = vadd.f32 %v109, %v139
    %141 = vdwg.mxu0
    %142 = vmatpush.msra.mxu0 0.0
    %143 = vmatpush.msra.mxu0 0.0
    %144 = vmatpush.msra.mxu0 0.0
    %145 = vmatpush.msra.mxu0 0.0
    %146 = vmatpush.msra.mxu0 0.0
    %147 = vmatpush.msra.mxu0 0.0
    %148 = vmatpush.msra.mxu0 0.0
    %149 = vmatpush.msra.mxu0 0.0
    %150 = vmatpush.msra.mxu0 0.0
    %151 = vmatpush.msra.mxu0 0.0
    %152 = vmatpush.msra.mxu0 0.0
    %153 = vmatpush.msra.mxu0 0.0
    %154 = vmatpush.msra.mxu0 0.0
    %155 = vmatpush.msra.mxu0 0.0
    %156 = vmatpush.msra.mxu0 0.0
    %157 = vmatpush.msra.mxu0 %v120
    %158 = vmatmul.f32.gmra.mxu0 %v113
    %v159 = vpop.f32.mrf.mxu0
    %v160 = vadd.f32 %v109, %v159
    %161 = vdwg.mxu0
    %v162 = vmax.f32 %v140, 0.0
    %v163 = vmax.f32 %v160, 0.0
    %165 = vset.pattern.permute.xlu0 0
    %166 = vperm.xlu0 %165, %v49
    %v167 = vpop.permute.xlu0 %166
    %170 = vset.pattern.permute.xlu0 0
    %171 = vperm.xlu0 %170, %v50
    %v172 = vpop.permute.xlu0 %171
    %v175 = vsel %vm111, %v45, 0
    %v178 = vsel %vm111, %v46, 0
    %v181 = vsel %vm115, %v162, 0
    %v184 = vsel %vm115, %v163, 0
    %186 = vmatpush.msra.mxu0 0.0
    %187 = vmatpush.msra.mxu0 0.0
    %188 = vmatpush.msra.mxu0 0.0
    %189 = vmatpush.msra.mxu0 0.0
    %190 = vmatpush.msra.mxu0 0.0
    %191 = vmatpush.msra.mxu0 0.0
    %192 = vmatpush.msra.mxu0 0.0
    %193 = vmatpush.msra.mxu0 0.0
    %194 = vmatpush.msra.mxu0 0.0
    %195 = vmatpush.msra.mxu0 0.0
    %196 = vmatpush.msra.mxu0 0.0
    %197 = vmatpush.msra.mxu0 0.0
    %198 = vmatpush.msra.mxu0 0.0
    %199 = vmatpush.msra.mxu0 0.0
    %200 = vmatpush.msra.mxu0 0.0
    %201 = vmatpush.msra.mxu0 %v181
    %202 = vmatmul.f32.gmra.mxu0 %v175
    %v203 = vpop.f32.mrf.mxu0
    %v204 = vadd.f32 %v167, %v203
    %205 = vmatmul.f32.gmra.mxu0 %v178
    %v206 = vpop.f32.mrf.mxu0
    %v207 = vadd.f32 %v172, %v206
    %208 = vdwg.mxu0
    %209 = vmatpush.msra.mxu0 0.0
    %210 = vmatpush.msra.mxu0 0.0
    %211 = vmatpush.msra.mxu0 0.0
    %212 = vmatpush.msra.mxu0 0.0
    %213 = vmatpush.msra.mxu0 0.0
    %214 = vmatpush.msra.mxu0 0.0
    %215 = vmatpush.msra.mxu0 0.0
    %216 = vmatpush.msra.mxu0 0.0
    %217 = vmatpush.msra.mxu0 0.0
    %218 = vmatpush.msra.mxu0 0.0
    %219 = vmatpush.msra.mxu0 0.0
    %220 = vmatpush.msra.mxu0 0.0
    %221 = vmatpush.msra.mxu0 0.0
    %222 = vmatpush.msra.mxu0 0.0
    %223 = vmatpush.msra.mxu0 0.0
    %224 = vmatpush.msra.mxu0 %v184
    %225 = vmatmul.f32.gmra.mxu0 %v175
    %v226 = vpop.f32.mrf.mxu0
    %v227 = vadd.f32 %v167, %v226
    %228 = vmatmul.f32.gmra.mxu0 %v178
    %v229 = vpop.f32.mrf.mxu0
    %v230 = vadd.f32 %v172, %v229
    %231 = vdwg.mxu0
    %v232 = vadd.f32 %v204, %v51
    %v233 = vadd.f32 %v227, %v52
    %v234 = vadd.f32 %v207, %v53
    %v235 = vadd.f32 %v230, %v54
    %v236 = vmax.f32 %v232, 0.0
    %v237 = vmax.f32 %v233, 0.0
    %v238 = vmax.f32 %v234, 0.0
    %v239 = vmax.f32 %v235, 0.0
    %240 = vst [vmem:[#allocation5] sm:$0xff] %v236
    %241 = vst [vmem:[#allocation5 + $0x8] sm:$0xff] %v237
    %242 = vst [vmem:[#allocation5 + $0x10] sm:$0xff] %v238
    %243 = vst [vmem:[#allocation5 + $0x18] sm:$0xff] %v239
    %s244 = scalar_lea.vmem [#allocation2], 32
    %v245 = vld [vmem:[%s244] sm:$0xff]
    %v246 = vld [vmem:[%s244 + $0x8] sm:$0xff]
    %v247 = vld [vmem:[%s244 + $0x10] sm:$0xff]
    %v248 = vld [vmem:[%s244 + $0x18] sm:$0xff]
    %249 = vmatpush.msra.mxu0 0.0
    %250 = vmatpush.msra.mxu0 0.0
    %251 = vmatpush.msra.mxu0 0.0
    %252 = vmatpush.msra.mxu0 0.0
    %253 = vmatpush.msra.mxu0 0.0
    %254 = vmatpush.msra.mxu0 0.0
    %255 = vmatpush.msra.mxu0 0.0
    %256 = vmatpush.msra.mxu0 0.0
    %257 = vmatpush.msra.mxu0 0.0
    %258 = vmatpush.msra.mxu0 0.0
    %259 = vmatpush.msra.mxu0 0.0
    %260 = vmatpush.msra.mxu0 0.0
    %261 = vmatpush.msra.mxu0 0.0
    %262 = vmatpush.msra.mxu0 0.0
    %263 = vmatpush.msra.mxu0 %v247
    %264 = vmatpush.msra.mxu0 %v245
    %265 = vmatmul.f32.gmra.mxu0 %v62
    %v266 = vpop.f32.mrf.mxu0
    %v267 = vadd.f32 %v58, %v266
    %268 = vdwg.mxu0
    %269 = vmatpush.msra.mxu0 0.0
    %270 = vmatpush.msra.mxu0 0.0
    %271 = vmatpush.msra.mxu0 0.0
    %272 = vmatpush.msra.mxu0 0.0
    %273 = vmatpush.msra.mxu0 0.0
    %274 = vmatpush.msra.mxu0 0.0
    %275 = vmatpush.msra.mxu0 0.0
    %276 = vmatpush.msra.mxu0 0.0
    %277 = vmatpush.msra.mxu0 0.0
    %278 = vmatpush.msra.mxu0 0.0
    %279 = vmatpush.msra.mxu0 0.0
    %280 = vmatpush.msra.mxu0 0.0
    %281 = vmatpush.msra.mxu0 0.0
    %282 = vmatpush.msra.mxu0 0.0
    %283 = vmatpush.msra.mxu0 %v248
    %284 = vmatpush.msra.mxu0 %v246
    %285 = vmatmul.f32.gmra.mxu0 %v62
    %v286 = vpop.f32.mrf.mxu0
    %v287 = vadd.f32 %v58, %v286
    %288 = vdwg.mxu0
    %v289 = vmax.f32 %v267, 0.0
    %v290 = vmax.f32 %v287, 0.0
    %v292 = vsel %vm115, %v289, 0
    %v295 = vsel %vm115, %v290, 0
    %297 = vmatpush.msra.mxu0 0.0
    %298 = vmatpush.msra.mxu0 0.0
    %299 = vmatpush.msra.mxu0 0.0
    %300 = vmatpush.msra.mxu0 0.0
    %301 = vmatpush.msra.mxu0 0.0
    %302 = vmatpush.msra.mxu0 0.0
    %303 = vmatpush.msra.mxu0 0.0
    %304 = vmatpush.msra.mxu0 0.0
    %305 = vmatpush.msra.mxu0 0.0
    %306 = vmatpush.msra.mxu0 0.0
    %307 = vmatpush.msra.mxu0 0.0
    %308 = vmatpush.msra.mxu0 0.0
    %309 = vmatpush.msra.mxu0 0.0
    %310 = vmatpush.msra.mxu0 0.0
    %311 = vmatpush.msra.mxu0 0.0
    %312 = vmatpush.msra.mxu0 %v292
    %313 = vmatmul.f32.gmra.mxu0 %v113
    %v314 = vpop.f32.mrf.mxu0
    %v315 = vadd.f32 %v109, %v314
    %316 = vdwg.mxu0
    %317 = vmatpush.msra.mxu0 0.0
    %318 = vmatpush.msra.mxu0 0.0
    %319 = vmatpush.msra.mxu0 0.0
    %320 = vmatpush.msra.mxu0 0.0
    %321 = vmatpush.msra.mxu0 0.0
    %322 = vmatpush.msra.mxu0 0.0
    %323 = vmatpush.msra.mxu0 0.0
    %324 = vmatpush.msra.mxu0 0.0
    %325 = vmatpush.msra.mxu0 0.0
    %326 = vmatpush.msra.mxu0 0.0
    %327 = vmatpush.msra.mxu0 0.0
    %328 = vmatpush.msra.mxu0 0.0
    %329 = vmatpush.msra.mxu0 0.0
    %330 = vmatpush.msra.mxu0 0.0
    %331 = vmatpush.msra.mxu0 0.0
    %332 = vmatpush.msra.mxu0 %v295
    %333 = vmatmul.f32.gmra.mxu0 %v113
    %v334 = vpop.f32.mrf.mxu0
    %v335 = vadd.f32 %v109, %v334
    %336 = vdwg.mxu0
    %v337 = vmax.f32 %v315, 0.0
    %v338 = vmax.f32 %v335, 0.0
    %v340 = vsel %vm115, %v337, 0
    %v343 = vsel %vm115, %v338, 0
    %345 = vmatpush.msra.mxu0 0.0
    %346 = vmatpush.msra.mxu0 0.0
    %347 = vmatpush.msra.mxu0 0.0
    %348 = vmatpush.msra.mxu0 0.0
    %349 = vmatpush.msra.mxu0 0.0
    %350 = vmatpush.msra.mxu0 0.0
    %351 = vmatpush.msra.mxu0 0.0
    %352 = vmatpush.msra.mxu0 0.0
    %353 = vmatpush.msra.mxu0 0.0
    %354 = vmatpush.msra.mxu0 0.0
    %355 = vmatpush.msra.mxu0 0.0
    %356 = vmatpush.msra.mxu0 0.0
    %357 = vmatpush.msra.mxu0 0.0
    %358 = vmatpush.msra.mxu0 0.0
    %359 = vmatpush.msra.mxu0 0.0
    %360 = vmatpush.msra.mxu0 %v340
    %361 = vmatmul.f32.gmra.mxu0 %v175
    %v362 = vpop.f32.mrf.mxu0
    %v363 = vadd.f32 %v167, %v362
    %364 = vmatmul.f32.gmra.mxu0 %v178
    %v365 = vpop.f32.mrf.mxu0
    %v366 = vadd.f32 %v172, %v365
    %367 = vdwg.mxu0
    %368 = vmatpush.msra.mxu0 0.0
    %369 = vmatpush.msra.mxu0 0.0
    %370 = vmatpush.msra.mxu0 0.0
    %371 = vmatpush.msra.mxu0 0.0
    %372 = vmatpush.msra.mxu0 0.0
    %373 = vmatpush.msra.mxu0 0.0
    %374 = vmatpush.msra.mxu0 0.0
    %375 = vmatpush.msra.mxu0 0.0
    %376 = vmatpush.msra.mxu0 0.0
    %377 = vmatpush.msra.mxu0 0.0
    %378 = vmatpush.msra.mxu0 0.0
    %379 = vmatpush.msra.mxu0 0.0
    %380 = vmatpush.msra.mxu0 0.0
    %381 = vmatpush.msra.mxu0 0.0
    %382 = vmatpush.msra.mxu0 0.0
    %383 = vmatpush.msra.mxu0 %v343
    %384 = vmatmul.f32.gmra.mxu0 %v175
    %v385 = vpop.f32.mrf.mxu0
    %v386 = vadd.f32 %v167, %v385
    %387 = vmatmul.f32.gmra.mxu0 %v178
    %v388 = vpop.f32.mrf.mxu0
    %v389 = vadd.f32 %v172, %v388
    %390 = vdwg.mxu0
    %v391 = vadd.f32 %v363, %v245
    %v392 = vadd.f32 %v386, %v246
    %v393 = vadd.f32 %v366, %v247
    %v394 = vadd.f32 %v389, %v248
    %v395 = vmax.f32 %v391, 0.0
    %v396 = vmax.f32 %v392, 0.0
    %v397 = vmax.f32 %v393, 0.0
    %v398 = vmax.f32 %v394, 0.0
    %s399 = scalar_lea.vmem [#allocation5], 32
    %400 = vst [vmem:[%s399] sm:$0xff] %v395
    %401 = vst [vmem:[%s399 + $0x8] sm:$0xff] %v396
    %402 = vst [vmem:[%s399 + $0x10] sm:$0xff] %v397
    %403 = vst [vmem:[%s399 + $0x18] sm:$0xff] %v398
    // Predicated region
    $region34: #{tpu_custom_call.1} parent=1 // pred_check
      _
    $region35: #{tpu_custom_call.1} parent=1 // pred_check_branch
      %405 = sbr.rel (0) target = $region37
    $region36: #{tpu_custom_call.1} parent=1 // pred_region
      %407 = vsyncadd [#allocation4], 0
      %s408 = sshll.u32 [#allocation5], 4
      %s409 = int_to_ptr.vmem [resolvable:$true] %s408
      %s410 = sshll.u32 %s7, 4
      %s411 = int_to_ptr.hbm [resolvable:$true] %s410
      %416 = dma.vmem_to_hbm [thread:$0]  %s409, 1024, %s411, [#allocation4], 256, 256, 16
    $region37: #{tpu_custom_call.1} parent=1 // pred_fallthru
      _
    // Predicated region
    $region38: #{tpu_custom_call.1} parent=1 // pred_check
      _
    $region39: #{tpu_custom_call.1} parent=1 // pred_check_branch
      %418 = sbr.rel (0) target = $region41
    $region40: #{tpu_custom_call.1} parent=1 // pred_region
      %420 = dma.done [#allocation4], 1024
    $region41: #{tpu_custom_call.1} parent=1 // pred_fallthru
      _
    %421 = vsyncpa [#allocation3], 1
    %422 = vsyncpa [#allocation4], 1

</llo_original>
